<compile_context>
chip_gen: v7x
topology: tpu7x:2x2x1
jax: 0.10.0
libtpu: 0.0.40
codegen_flags: <defaults>
</compile_context>

<pallas_src>
import jax
import jax.numpy as jnp
import numpy as np
from jax.experimental import pallas as pl
from jax.experimental.pallas import tpu as pltpu

H1, H2 = 400, 300          # logical hidden widths (PyTorch module)
H1P, H2P = 512, 384        # lane-padded hidden widths used inside the kernel
EPS = 1e-5                 # BatchNorm1d default eps


def _actor_kernel(scal_ref, x_ref, w1_ref, w2_ref, vec_ref, out_ref):
    # scal_ref (SMEM, (2,)): [scaled, b3]
    scaled = scal_ref[0]
    b3 = scal_ref[1]

    # ---- fc1 (bf16 operands, fp32 accumulate) -----------------------------
    x = x_ref[...].astype(jnp.bfloat16)                                # (B, D)
    h1 = jnp.dot(x, w1_ref[...], preferred_element_type=jnp.float32)  # (B, H1P)

    # ---- bn1 (training-mode batch stats, biased var) + relu ---------------
    # Single pass: var = E[h^2] - mean^2 (fp32, clamped against rounding).
    m1 = jnp.mean(h1, axis=0, keepdims=True)
    msq1 = jnp.mean(h1 * h1, axis=0, keepdims=True)
    v1 = jnp.maximum(msq1 - m1 * m1, 0.0)
    g1 = vec_ref[0:1, :]                                               # (1, H1P)
    bt1 = vec_ref[1:2, :]
    scale1 = g1 * jax.lax.rsqrt(v1 + EPS)
    shift1 = bt1 - m1 * scale1
    h1 = jnp.maximum(h1 * scale1 + shift1, 0.0)

    # ---- fc2 + bn2 + relu ---------------------------------------------------
    h2 = jnp.dot(h1.astype(jnp.bfloat16), w2_ref[...],
                 preferred_element_type=jnp.float32)                   # (B, H2P)
    m2 = jnp.mean(h2, axis=0, keepdims=True)
    msq2 = jnp.mean(h2 * h2, axis=0, keepdims=True)
    v2 = jnp.maximum(msq2 - m2 * m2, 0.0)
    g2 = vec_ref[2:3, :H2P]
    bt2 = vec_ref[3:4, :H2P]
    scale2 = g2 * jax.lax.rsqrt(v2 + EPS)
    shift2 = bt2 - m2 * scale2
    h2 = jnp.maximum(h2 * scale2 + shift2, 0.0)

    # ---- fc3 as VPU multiply + lane reduce (avoids an N=1 MXU matmul) ------
    w3_row = vec_ref[4:5, :H2P]                                        # (1, H2P), zero pads
    out = jnp.sum(h2 * w3_row, axis=-1, keepdims=True) + b3            # (B, 1)
    out = jnp.tanh(out) * scaled
    out_ref[...] = out.astype(out_ref.dtype)


def _vmem_limit_bytes(batch, inputs):
    """Scoped-VMEM request sized from the actual working set (with headroom)."""
    # Batch-independent weight bytes: w1 bf16, w2 bf16, packed vec fp32.
    weight_bytes = inputs * H1P * 2 + H1P * H2P * 2 + 5 * H1P * 4
    # Per-row live bytes: x fp32 + bf16 copy, h1 fp32 + bf16 copy, h2 fp32,
    # lane-padded output column; 2x margin for compiler temporaries.
    per_row = inputs * (4 + 2) + H1P * (4 + 2) + H2P * 4 + 128 * 4
    need = weight_bytes + 2 * batch * per_row + (4 << 20)
    try:
        cap = int(pltpu.get_tpu_info().vmem_capacity_bytes * 0.9)
    except Exception:
        cap = 64 << 20   # conservative: v7x physical VMEM is 64 MiB per core
    return int(min(max(need, 16 << 20), cap))


def actor_forward(x, packed, scaled):
    """x: (B, inputs) fp32; packed: output of pack_actor_params; returns (B, 1) fp32."""
    B, inputs = x.shape
    scal = jnp.concatenate([jnp.full((1,), scaled, jnp.float32),
                            packed["b3"].astype(jnp.float32).reshape(1)])
    vmem = pl.BlockSpec(memory_space=pltpu.MemorySpace.VMEM)
    smem = pl.BlockSpec(memory_space=pltpu.MemorySpace.SMEM)
    return pl.pallas_call(
        _actor_kernel,
        out_shape=jax.ShapeDtypeStruct((B, 1), jnp.float32),
        in_specs=[smem, vmem, vmem, vmem, vmem],
        out_specs=vmem,
        compiler_params=pltpu.CompilerParams(
            vmem_limit_bytes=_vmem_limit_bytes(B, inputs)),
    )(scal, x, packed["w1"], packed["w2"], packed["vec"])


def init_actor_params(key, inputs):
    """Raw (unpadded, fp32) params matching the PyTorch module's init scheme."""
    ks = jax.random.split(key, 6)
    # fanin_init uses fanin = weight.size(0) == out_features (as written).
    w1_bound = 1.0 / np.sqrt(H1)
    w2_bound = 1.0 / np.sqrt(H2)
    # nn.Linear default bias init: U(-1/sqrt(in_features), 1/sqrt(in_features))
    b1_bound = 1.0 / np.sqrt(inputs)
    b2_bound = 1.0 / np.sqrt(H1)
    b3_bound = 1.0 / np.sqrt(H2)
    return {
        # weights stored transposed: (in, out)
        "w1": jax.random.uniform(ks[0], (inputs, H1), jnp.float32, -w1_bound, w1_bound),
        "b1": jax.random.uniform(ks[1], (H1,), jnp.float32, -b1_bound, b1_bound),
        "g1": jnp.ones((H1,), jnp.float32),     # BatchNorm1d gamma
        "bt1": jnp.zeros((H1,), jnp.float32),   # BatchNorm1d beta
        "w2": jax.random.uniform(ks[2], (H1, H2), jnp.float32, -w2_bound, w2_bound),
        "b2": jax.random.uniform(ks[3], (H2,), jnp.float32, -b2_bound, b2_bound),
        "g2": jnp.ones((H2,), jnp.float32),
        "bt2": jnp.zeros((H2,), jnp.float32),
        "w3": jax.random.uniform(ks[4], (H2,), jnp.float32, -0.003, 0.003),
        "b3": jax.random.uniform(ks[5], (1,), jnp.float32, -b3_bound, b3_bound),
    }


def pack_actor_params(p, inputs):
    """Kernel layout: bf16 weights, lane-padded widths, small vectors packed.

    Padding invariants the kernel depends on (checked below):
      * pad columns of w1 / w2 and pad rows of w2 are exactly zero, so padded
        hidden features are exactly 0 before BN;
      * pad lanes of gamma/beta/w3 are exactly zero, so padded features stay 0
        through the BN affine / ReLU and contribute nothing to fc3.
    (b1/b2 are intentionally dropped: cancelled by training-mode BatchNorm.)
    """
    w1 = jnp.zeros((inputs, H1P), jnp.bfloat16).at[:, :H1].set(
        p["w1"].astype(jnp.bfloat16))
    w2 = jnp.zeros((H1P, H2P), jnp.bfloat16).at[:H1, :H2].set(
        p["w2"].astype(jnp.bfloat16))
    vec = jnp.zeros((5, H1P), jnp.float32)
    vec = vec.at[0, :H1].set(p["g1"])
    vec = vec.at[1, :H1].set(p["bt1"])
    vec = vec.at[2, :H2].set(p["g2"])
    vec = vec.at[3, :H2].set(p["bt2"])
    vec = vec.at[4, :H2].set(p["w3"])
    # One-time (per parameter update) host-side checks of the invariants.
    assert int(jnp.count_nonzero(w1[:, H1:])) == 0
    assert int(jnp.count_nonzero(w2[H1:, :])) == 0
    assert int(jnp.count_nonzero(w2[:, H2:])) == 0
    assert int(jnp.count_nonzero(vec[0:2, H1:])) == 0
    assert int(jnp.count_nonzero(vec[2:5, H2:])) == 0
    return {"w1": w1, "w2": w2, "vec": vec, "b3": p["b3"]}


if __name__ == "__main__":
    key = jax.random.PRNGKey(0)
    k_param, k_x = jax.random.split(key)

    batch, inputs, scaled = 8, 32, 2.0
    raw = init_actor_params(k_param, inputs)
    packed = pack_actor_params(raw, inputs)
    x = jax.random.normal(k_x, (batch, inputs), jnp.float32)

    out = actor_forward(x, packed, scaled)
    out = jax.block_until_ready(out)

    # Pure-JAX reference of the PyTorch forward (training-mode BN, includes the
    # BN-cancelled biases) with the same bf16 matmul operand casts.
    def ref(x, p):
        def bn(h, g, bt):
            m = h.mean(0, keepdims=True)
            v = ((h - m) ** 2).mean(0, keepdims=True)
            return (h - m) * jax.lax.rsqrt(v + EPS) * g + bt
        w1 = p["w1"].astype(jnp.bfloat16)
        w2 = p["w2"].astype(jnp.bfloat16)
        h1 = jnp.dot(x.astype(jnp.bfloat16), w1,
                     preferred_element_type=jnp.float32) + p["b1"]
        h1 = jnp.maximum(bn(h1, p["g1"], p["bt1"]), 0.0)
        h2 = jnp.dot(h1.astype(jnp.bfloat16), w2,
                     preferred_element_type=jnp.float32) + p["b2"]
        h2 = jnp.maximum(bn(h2, p["g2"], p["bt2"]), 0.0)
        return jnp.tanh(h2 @ p["w3"][:, None] + p["b3"]) * scaled

    np.testing.assert_allclose(np.asarray(out), np.asarray(ref(x, raw)),
                               rtol=1e-3, atol=1e-3)
    assert out.shape == (batch, 1)
    print("KERNEL_OK")
</pallas_src>

<mosaic_0001>
module attributes {stable_mosaic.version = 11 : i64} {
  func.func @_actor_kernel(%arg0: memref<2xf32, #tpu.memory_space<smem>>, %arg1: memref<8x32xf32, #tpu.memory_space<vmem>>, %arg2: memref<32x512xbf16, #tpu.memory_space<vmem>>, %arg3: memref<512x384xbf16, #tpu.memory_space<vmem>>, %arg4: memref<5x512xf32, #tpu.memory_space<vmem>>, %arg5: memref<8x1xf32, #tpu.memory_space<vmem>>) attributes {dimension_semantics = [], scalar_prefetch = 0 : i64, scratch_operands = 0 : i64, tpu.core_type = #tpu.core_type<tc>} {
    %c0 = arith.constant 0 : index
    %0 = memref.load %arg0[%c0] : memref<2xf32, #tpu.memory_space<smem>>
    %c1 = arith.constant 1 : index
    %1 = memref.load %arg0[%c1] : memref<2xf32, #tpu.memory_space<smem>>
    %c0_0 = arith.constant 0 : index
    %c0_1 = arith.constant 0 : index
    %2 = vector.load %arg1[%c0_0, %c0_1] : memref<8x32xf32, #tpu.memory_space<vmem>>, vector<8x32xf32>
    %3 = arith.truncf %2 : vector<8x32xf32> to vector<8x32xbf16>
    %c0_2 = arith.constant 0 : index
    %c0_3 = arith.constant 0 : index
    %4 = vector.load %arg2[%c0_2, %c0_3] : memref<32x512xbf16, #tpu.memory_space<vmem>>, vector<32x512xbf16>
    %cst = arith.constant dense<0.000000e+00> : vector<8x512xf32>
    %5 = tpu.matmul %3, %4, %cst {dimension_numbers = #tpu.dot_dimension_numbers<[1], [0], [0], [1], [0, 0, 1, 1], [], []>} : vector<8x32xbf16>, vector<32x512xbf16>, vector<8x512xf32> -> vector<8x512xf32>
    %cst_4 = arith.constant dense<0.000000e+00> : vector<512xf32>
    %6 = vector.multi_reduction <add>, %5, %cst_4 [0] : vector<8x512xf32> to vector<512xf32>
    %7 = vector.shape_cast %6 : vector<512xf32> to vector<1x512xf32>
    %cst_5 = arith.constant 8.000000e+00 : f32
    %8 = vector.broadcast %cst_5 : f32 to vector<1x512xf32>
    %9 = arith.divf %7, %8 : vector<1x512xf32>
    %10 = arith.mulf %5, %5 : vector<8x512xf32>
    %cst_6 = arith.constant dense<0.000000e+00> : vector<512xf32>
    %11 = vector.multi_reduction <add>, %10, %cst_6 [0] : vector<8x512xf32> to vector<512xf32>
    %12 = vector.shape_cast %11 : vector<512xf32> to vector<1x512xf32>
    %cst_7 = arith.constant 8.000000e+00 : f32
    %13 = vector.broadcast %cst_7 : f32 to vector<1x512xf32>
    %14 = arith.divf %12, %13 : vector<1x512xf32>
    %15 = arith.mulf %9, %9 : vector<1x512xf32>
    %16 = arith.subf %14, %15 : vector<1x512xf32>
    %cst_8 = arith.constant 0.000000e+00 : f32
    %17 = vector.broadcast %cst_8 : f32 to vector<1x512xf32>
    %18 = arith.maximumf %16, %17 : vector<1x512xf32>
    %c0_9 = arith.constant 0 : index
    %c0_10 = arith.constant 0 : index
    %19 = vector.load %arg4[%c0_9, %c0_10] : memref<5x512xf32, #tpu.memory_space<vmem>>, vector<1x512xf32>
    %c1_11 = arith.constant 1 : index
    %c0_12 = arith.constant 0 : index
    %20 = vector.load %arg4[%c1_11, %c0_12] : memref<5x512xf32, #tpu.memory_space<vmem>>, vector<1x512xf32>
    %cst_13 = arith.constant 9.99999974E-6 : f32
    %21 = vector.broadcast %cst_13 : f32 to vector<1x512xf32>
    %22 = arith.addf %18, %21 : vector<1x512xf32>
    %23 = math.rsqrt %22 : vector<1x512xf32>
    %24 = arith.mulf %19, %23 : vector<1x512xf32>
    %25 = arith.mulf %9, %24 : vector<1x512xf32>
    %26 = arith.subf %20, %25 : vector<1x512xf32>
    %27 = vector.broadcast %24 : vector<1x512xf32> to vector<8x512xf32>
    %28 = arith.mulf %5, %27 : vector<8x512xf32>
    %29 = vector.broadcast %26 : vector<1x512xf32> to vector<8x512xf32>
    %30 = arith.addf %28, %29 : vector<8x512xf32>
    %cst_14 = arith.constant 0.000000e+00 : f32
    %31 = vector.broadcast %cst_14 : f32 to vector<8x512xf32>
    %32 = arith.maximumf %30, %31 : vector<8x512xf32>
    %33 = arith.truncf %32 : vector<8x512xf32> to vector<8x512xbf16>
    %c0_15 = arith.constant 0 : index
    %c0_16 = arith.constant 0 : index
    %34 = vector.load %arg3[%c0_15, %c0_16] : memref<512x384xbf16, #tpu.memory_space<vmem>>, vector<512x384xbf16>
    %cst_17 = arith.constant dense<0.000000e+00> : vector<8x384xf32>
    %35 = tpu.matmul %33, %34, %cst_17 {dimension_numbers = #tpu.dot_dimension_numbers<[1], [0], [0], [1], [0, 0, 1, 1], [], []>} : vector<8x512xbf16>, vector<512x384xbf16>, vector<8x384xf32> -> vector<8x384xf32>
    %cst_18 = arith.constant dense<0.000000e+00> : vector<384xf32>
    %36 = vector.multi_reduction <add>, %35, %cst_18 [0] : vector<8x384xf32> to vector<384xf32>
    %37 = vector.shape_cast %36 : vector<384xf32> to vector<1x384xf32>
    %cst_19 = arith.constant 8.000000e+00 : f32
    %38 = vector.broadcast %cst_19 : f32 to vector<1x384xf32>
    %39 = arith.divf %37, %38 : vector<1x384xf32>
    %40 = arith.mulf %35, %35 : vector<8x384xf32>
    %cst_20 = arith.constant dense<0.000000e+00> : vector<384xf32>
    %41 = vector.multi_reduction <add>, %40, %cst_20 [0] : vector<8x384xf32> to vector<384xf32>
    %42 = vector.shape_cast %41 : vector<384xf32> to vector<1x384xf32>
    %cst_21 = arith.constant 8.000000e+00 : f32
    %43 = vector.broadcast %cst_21 : f32 to vector<1x384xf32>
    %44 = arith.divf %42, %43 : vector<1x384xf32>
    %45 = arith.mulf %39, %39 : vector<1x384xf32>
    %46 = arith.subf %44, %45 : vector<1x384xf32>
    %cst_22 = arith.constant 0.000000e+00 : f32
    %47 = vector.broadcast %cst_22 : f32 to vector<1x384xf32>
    %48 = arith.maximumf %46, %47 : vector<1x384xf32>
    %c2 = arith.constant 2 : index
    %c0_23 = arith.constant 0 : index
    %49 = vector.load %arg4[%c2, %c0_23] : memref<5x512xf32, #tpu.memory_space<vmem>>, vector<1x384xf32>
    %c3 = arith.constant 3 : index
    %c0_24 = arith.constant 0 : index
    %50 = vector.load %arg4[%c3, %c0_24] : memref<5x512xf32, #tpu.memory_space<vmem>>, vector<1x384xf32>
    %cst_25 = arith.constant 9.99999974E-6 : f32
    %51 = vector.broadcast %cst_25 : f32 to vector<1x384xf32>
    %52 = arith.addf %48, %51 : vector<1x384xf32>
    %53 = math.rsqrt %52 : vector<1x384xf32>
    %54 = arith.mulf %49, %53 : vector<1x384xf32>
    %55 = arith.mulf %39, %54 : vector<1x384xf32>
    %56 = arith.subf %50, %55 : vector<1x384xf32>
    %57 = vector.broadcast %54 : vector<1x384xf32> to vector<8x384xf32>
    %58 = arith.mulf %35, %57 : vector<8x384xf32>
    %59 = vector.broadcast %56 : vector<1x384xf32> to vector<8x384xf32>
    %60 = arith.addf %58, %59 : vector<8x384xf32>
    %cst_26 = arith.constant 0.000000e+00 : f32
    %61 = vector.broadcast %cst_26 : f32 to vector<8x384xf32>
    %62 = arith.maximumf %60, %61 : vector<8x384xf32>
    %c4 = arith.constant 4 : index
    %c0_27 = arith.constant 0 : index
    %63 = vector.load %arg4[%c4, %c0_27] : memref<5x512xf32, #tpu.memory_space<vmem>>, vector<1x384xf32>
    %64 = vector.broadcast %63 : vector<1x384xf32> to vector<8x384xf32>
    %65 = arith.mulf %62, %64 : vector<8x384xf32>
    %cst_28 = arith.constant dense<0.000000e+00> : vector<8xf32>
    %66 = vector.multi_reduction <add>, %65, %cst_28 [1] : vector<8x384xf32> to vector<8xf32>
    %67 = vector.shape_cast %66 : vector<8xf32> to vector<8x1xf32>
    %68 = vector.broadcast %1 : f32 to vector<8x1xf32>
    %69 = arith.addf %67, %68 : vector<8x1xf32>
    %70 = math.tanh %69 : vector<8x1xf32>
    %71 = vector.broadcast %0 : f32 to vector<8x1xf32>
    %72 = arith.mulf %70, %71 : vector<8x1xf32>
    %c0_29 = arith.constant 0 : index
    %c0_30 = arith.constant 0 : index
    %73 = vector.load %arg5[%c0_29, %c0_30] : memref<8x1xf32, #tpu.memory_space<vmem>>, vector<8x1xf32>
    tpu.vector_store %arg5[%c0_29, %c0_30], %72 {strides = array<i32>} : memref<8x1xf32, #tpu.memory_space<vmem>>, vector<8x1xf32>,
    return
  }
}

</mosaic_0001>

<llo_original>
// kernel: tpu_custom_call.1
$region0: #{tpu_custom_call.1}
  #allocation0 [shape = 'u32[]', space=smem, size = 0x4, offset = 0x4, fixed_abs, tag = 'smem constant byte address 0x4 - core index']
  #allocation1 [shape = 'u32[144,128]{1,0:T(1,128)}', space=vmem, size = 0x12000, scoped, tag = 'internal scratch']
  %s0 = inlined_call_operand.hbm [shape: f32[2], index: 0, kind: input, shape index: {}]
  %s1 = inlined_call_operand.hbm [shape: f32[8,32], index: 1, kind: input, shape index: {}]
  %s2 = inlined_call_operand.hbm [shape: bf16[32,512], index: 2, kind: input, shape index: {}]
  %s3 = inlined_call_operand.hbm [shape: bf16[512,384], index: 3, kind: input, shape index: {}]
  %s4 = inlined_call_operand.hbm [shape: f32[5,512], index: 4, kind: input, shape index: {}]
  %s5 = inlined_call_operand.vmem [shape: f32[8,1], index: 5, kind: output, shape index: {}]
  %s6 = sld [smem:[#allocation0]]
  $region50: #{tpu_custom_call.1} parent=0
    _
  %s8 = ssub.s32 1, %s6
  %s9 = scalar_select 0, %s8, %s6
  $region1: #{tpu_custom_call.1} parent=0
    #allocation2 [shape = 'u8[512]{0}', space=smem, size = 0x200, scoped, tag = 'input window, operand 0, single buffered']
    #allocation3 [shape = 's32[1]{0}', space=sflag, size = 0x4, scoped, tag = 'scoped memory for tpu_custom_call.1']
    #allocation4 [shape = 's32[1]{0}', space=sflag, size = 0x4, scoped, tag = 'scoped memory for tpu_custom_call.1']
    #allocation5 [shape = 'u8[4096]{0}', space=vmem, size = 0x1000, scoped, tag = 'input window, operand 1, single buffered']
    #allocation6 [shape = 'u8[32768]{0}', space=vmem, size = 0x8000, scoped, tag = 'input window, operand 2, single buffered']
    #allocation7 [shape = 's32[1]{0}', space=sflag, size = 0x4, scoped, tag = 'scoped memory for tpu_custom_call.1']
    #allocation8 [shape = 'u8[393216]{0}', space=vmem, size = 0x60000, scoped, tag = 'input window, operand 3, single buffered']
    #allocation9 [shape = 'u8[16384]{0}', space=vmem, size = 0x4000, scoped, tag = 'input window, operand 4, single buffered']
    #allocation10 [shape = 's32[1]{0}', space=sflag, size = 0x4, scoped, tag = 'scoped memory for tpu_custom_call.1']
    %10 = vsyncpa [#allocation4], 0
    %11 = vsyncpa [#allocation3], 0
    %12 = vsyncpa [#allocation7], 0
    %13 = vsyncpa [#allocation10], 0
    // Predicated region
    $region2: #{tpu_custom_call.1} parent=1 // pred_check
      _
    $region3: #{tpu_custom_call.1} parent=1 // pred_check_branch
      %15 = sbr.rel (0) target = $region5
    $region4: #{tpu_custom_call.1} parent=1 // pred_region
      %s17 = ssub.s32 16, 16
      %18 = vsyncadd [#allocation4], %s17
      %21 = dma.hbm_to_smem %s0, 16, [#allocation2], [#allocation4]
    $region5: #{tpu_custom_call.1} parent=1 // pred_fallthru
      _
    // Predicated region
    $region6: #{tpu_custom_call.1} parent=1 // pred_check
      _
    $region7: #{tpu_custom_call.1} parent=1 // pred_check_branch
      %23 = sbr.rel (0) target = $region9
    $region8: #{tpu_custom_call.1} parent=1 // pred_region
      %s25 = ssub.s32 128, 128
      %26 = vsyncadd [#allocation3], %s25
      %s28 = sshll.u32 [#allocation5], 4
      %s29 = int_to_ptr.vmem [resolvable:$true] %s28
      %31 = dma.hbm_to_vmem [thread:$0]  %s1, 128, %s29, [#allocation3]
    $region9: #{tpu_custom_call.1} parent=1 // pred_fallthru
      _
    // Predicated region
    $region10: #{tpu_custom_call.1} parent=1 // pred_check
      _
    $region11: #{tpu_custom_call.1} parent=1 // pred_check_branch
      %33 = sbr.rel (0) target = $region13
    $region12: #{tpu_custom_call.1} parent=1 // pred_region
      %s35 = ssub.s32 1024, 1024
      %36 = vsyncadd [#allocation7], %s35
      %s37 = sshll.u32 [#allocation6], 4
      %s38 = int_to_ptr.vmem [resolvable:$true] %s37
      %43 = dma.hbm_to_vmem [thread:$0]  %s2, 1024, %s38, [#allocation7], 256, 256, 16
    $region13: #{tpu_custom_call.1} parent=1 // pred_fallthru
      _
    // Predicated region
    $region14: #{tpu_custom_call.1} parent=1 // pred_check
      _
    $region15: #{tpu_custom_call.1} parent=1 // pred_check_branch
      %45 = sbr.rel (0) target = $region17
    $region16: #{tpu_custom_call.1} parent=1 // pred_region
      %s47 = ssub.s32 12288, 12288
      %48 = vsyncadd [#allocation7], %s47
      %s49 = sshll.u32 [#allocation8], 4
      %s50 = int_to_ptr.vmem [resolvable:$true] %s49
      %55 = dma.hbm_to_vmem [thread:$0]  %s3, 12288, %s50, [#allocation7], 192, 192, 12
    $region17: #{tpu_custom_call.1} parent=1 // pred_fallthru
      _
    // Predicated region
    $region18: #{tpu_custom_call.1} parent=1 // pred_check
      _
    $region19: #{tpu_custom_call.1} parent=1 // pred_check_branch
      %57 = sbr.rel (0) target = $region21
    $region20: #{tpu_custom_call.1} parent=1 // pred_region
      %s59 = ssub.s32 512, 512
      %60 = vsyncadd [#allocation10], %s59
      %s62 = sshll.u32 [#allocation9], 4
      %s63 = int_to_ptr.vmem [resolvable:$true] %s62
      %65 = dma.hbm_to_vmem [thread:$0]  %s4, 512, %s63, [#allocation10]
    $region21: #{tpu_custom_call.1} parent=1 // pred_fallthru
      _
    // Predicated region
    $region22: #{tpu_custom_call.1} parent=1 // pred_check
      _
    $region23: #{tpu_custom_call.1} parent=1 // pred_check_branch
      %67 = sbr.rel (0) target = $region25
    $region24: #{tpu_custom_call.1} parent=1 // pred_region
      %68 = dma.done [#allocation4], 16
    $region25: #{tpu_custom_call.1} parent=1 // pred_fallthru
      _
    // Predicated region
    $region26: #{tpu_custom_call.1} parent=1 // pred_check
      _
    $region27: #{tpu_custom_call.1} parent=1 // pred_check_branch
      %70 = sbr.rel (0) target = $region29
    $region28: #{tpu_custom_call.1} parent=1 // pred_region
      %71 = dma.done [#allocation3], 128
    $region29: #{tpu_custom_call.1} parent=1 // pred_fallthru
      _
    // Predicated region
    $region30: #{tpu_custom_call.1} parent=1 // pred_check
      _
    $region31: #{tpu_custom_call.1} parent=1 // pred_check_branch
      %73 = sbr.rel (0) target = $region33
    $region32: #{tpu_custom_call.1} parent=1 // pred_region
      %74 = dma.done [#allocation7], 1024
    $region33: #{tpu_custom_call.1} parent=1 // pred_fallthru
      _
    // Predicated region
    $region34: #{tpu_custom_call.1} parent=1 // pred_check
      _
    $region35: #{tpu_custom_call.1} parent=1 // pred_check_branch
      %76 = sbr.rel (0) target = $region37
    $region36: #{tpu_custom_call.1} parent=1 // pred_region
      %77 = dma.done [#allocation7], 12288
    $region37: #{tpu_custom_call.1} parent=1 // pred_fallthru
      _
    // Predicated region
    $region38: #{tpu_custom_call.1} parent=1 // pred_check
      _
    $region39: #{tpu_custom_call.1} parent=1 // pred_check_branch
      %79 = sbr.rel (0) target = $region41
    $region40: #{tpu_custom_call.1} parent=1 // pred_region
      %80 = dma.done [#allocation10], 512
    $region41: #{tpu_custom_call.1} parent=1 // pred_fallthru
      _
    %81 = sfence
    %s83 = sld [smem:[#allocation2]]
    %s84 = sld [smem:[#allocation2 + $0x1]]
    %v85 = vld [vmem:[#allocation5] sm:$0xff]
    %v86 = vpack.c.bf16 %v85, %v85
    %v87 = vld [vmem:[#allocation6] sm:$0xff]
    %v88 = vld [vmem:[#allocation6 + $0x8] sm:$0xff]
    %v89 = vld [vmem:[#allocation6 + $0x10] sm:$0xff]
    %v90 = vld [vmem:[#allocation6 + $0x18] sm:$0xff]
    %v91 = vld [vmem:[#allocation6 + $0x20] sm:$0xff]
    %v92 = vld [vmem:[#allocation6 + $0x28] sm:$0xff]
    %v93 = vld [vmem:[#allocation6 + $0x30] sm:$0xff]
    %v94 = vld [vmem:[#allocation6 + $0x38] sm:$0xff]
    %v103 = vunpack.c.l.b16 %v87
    %v104 = vunpack.c.h.b16 %v87
    %v105 = vunpack.c.l.b16 %v88
    %v106 = vunpack.c.h.b16 %v88
    %v107 = vunpack.c.l.b16 %v89
    %v108 = vunpack.c.h.b16 %v89
    %v109 = vunpack.c.l.b16 %v90
    %v110 = vunpack.c.h.b16 %v90
    %v111 = vunpack.c.l.b16 %v91
    %v112 = vunpack.c.h.b16 %v91
    %v113 = vunpack.c.l.b16 %v92
    %v114 = vunpack.c.h.b16 %v92
    %v115 = vunpack.c.l.b16 %v93
    %v116 = vunpack.c.h.b16 %v93
    %v117 = vunpack.c.l.b16 %v94
    %v118 = vunpack.c.h.b16 %v94
    %v119 = vpack.c.b16 %v107, %v103
    %v120 = vpack.c.b16 %v108, %v104
    %v121 = vpack.c.b16 %v109, %v105
    %v122 = vpack.c.b16 %v110, %v106
    %v123 = vpack.c.b16 %v115, %v111
    %v124 = vpack.c.b16 %v116, %v112
    %v125 = vpack.c.b16 %v117, %v113
    %v126 = vpack.c.b16 %v118, %v114
    %vm135 = vcmask 261120
    %v137 = vsel %vm135, %v86, 0
    %139 = vmatprep.subr.bf16.mxu0 %v120
    %140 = vmatpush1.bf16.msra.mxu0 %v119
    %141 = vmatprep.subr.bf16.mxu0 %v124
    %142 = vmatpush1.bf16.msra.mxu0 %v123
    %143 = vmatprep.subr.bf16.mxu0 0
    %144 = vmatpush1.bf16.msra.mxu0 0
    %145 = vmatprep.subr.bf16.mxu0 0
    %146 = vmatpush1.bf16.msra.mxu0 0
    %147 = vmatprep.subr.bf16.mxu0 0
    %148 = vmatpush1.bf16.msra.mxu0 0
    %149 = vmatprep.subr.bf16.mxu0 0
    %150 = vmatpush1.bf16.msra.mxu0 0
    %151 = vmatprep.subr.bf16.mxu0 0
    %152 = vmatpush1.bf16.msra.mxu0 0
    %153 = vmatprep.subr.bf16.mxu0 0
    %154 = vmatpush1.bf16.msra.mxu0 0
    %155 = vmatprep.subr.bf16.mxu0 0
    %156 = vmatpush1.bf16.msra.mxu0 0
    %157 = vmatprep.subr.bf16.mxu0 0
    %158 = vmatpush1.bf16.msra.mxu0 0
    %159 = vmatprep.subr.bf16.mxu0 0
    %160 = vmatpush1.bf16.msra.mxu0 0
    %161 = vmatprep.subr.bf16.mxu0 0
    %162 = vmatpush1.bf16.msra.mxu0 0
    %163 = vmatprep.subr.bf16.mxu0 0
    %164 = vmatpush1.bf16.msra.mxu0 0
    %165 = vmatprep.subr.bf16.mxu0 0
    %166 = vmatpush1.bf16.msra.mxu0 0
    %167 = vmatprep.subr.bf16.mxu0 0
    %168 = vmatpush1.bf16.msra.mxu0 0
    %169 = vmatprep.subr.bf16.mxu0 0
    %170 = vmatpush1.bf16.msra.mxu0 0
    %171 = vmatprep.mubr.bf16.mxu0 0
    %172 = vmatmul.mubr.bf16.gmra.mrb[0].mxu0 %v137
    %v173 = vpop.f32.mrb[0].mxu0
    %v174 = vadd.f32 0.0, %v173
    %v175 = vpop.f32.mrb[0].mxu0
    %v176 = vadd.f32 0.0, %v175
    %v177 = vpop.f32.mrb[0].mxu0
    %v178 = vpop.f32.mrb[0].mxu0
    %179 = vdwg.mxu0
    %180 = vmatprep.subr.bf16.mxu0 %v122
    %181 = vmatpush1.bf16.msra.mxu0 %v121
    %182 = vmatprep.subr.bf16.mxu0 %v126
    %183 = vmatpush1.bf16.msra.mxu0 %v125
    %184 = vmatprep.subr.bf16.mxu0 0
    %185 = vmatpush1.bf16.msra.mxu0 0
    %186 = vmatprep.subr.bf16.mxu0 0
    %187 = vmatpush1.bf16.msra.mxu0 0
    %188 = vmatprep.subr.bf16.mxu0 0
    %189 = vmatpush1.bf16.msra.mxu0 0
    %190 = vmatprep.subr.bf16.mxu0 0
    %191 = vmatpush1.bf16.msra.mxu0 0
    %192 = vmatprep.subr.bf16.mxu0 0
    %193 = vmatpush1.bf16.msra.mxu0 0
    %194 = vmatprep.subr.bf16.mxu0 0
    %195 = vmatpush1.bf16.msra.mxu0 0
    %196 = vmatprep.subr.bf16.mxu0 0
    %197 = vmatpush1.bf16.msra.mxu0 0
    %198 = vmatprep.subr.bf16.mxu0 0
    %199 = vmatpush1.bf16.msra.mxu0 0
    %200 = vmatprep.subr.bf16.mxu0 0
    %201 = vmatpush1.bf16.msra.mxu0 0
    %202 = vmatprep.subr.bf16.mxu0 0
    %203 = vmatpush1.bf16.msra.mxu0 0
    %204 = vmatprep.subr.bf16.mxu0 0
    %205 = vmatpush1.bf16.msra.mxu0 0
    %206 = vmatprep.subr.bf16.mxu0 0
    %207 = vmatpush1.bf16.msra.mxu0 0
    %208 = vmatprep.subr.bf16.mxu0 0
    %209 = vmatpush1.bf16.msra.mxu0 0
    %210 = vmatprep.subr.bf16.mxu0 0
    %211 = vmatpush1.bf16.msra.mxu0 0
    %212 = vmatprep.mubr.bf16.mxu0 0
    %213 = vmatmul.mubr.bf16.gmra.mrb[0].mxu0 %v137
    %v214 = vpop.f32.mrb[0].mxu0
    %v215 = vadd.f32 0.0, %v214
    %v216 = vpop.f32.mrb[0].mxu0
    %v217 = vadd.f32 0.0, %v216
    %v218 = vpop.f32.mrb[0].mxu0
    %v219 = vpop.f32.mrb[0].mxu0
    %220 = vdwg.mxu0
    %v221 = vrot.slane %v174, 4
    %v222 = vadd.f32 %v174, %v221
    %v223 = vrot.slane %v222, 2
    %v224 = vadd.f32 %v222, %v223
    %v225 = vrot.slane %v224, 1
    %v226 = vadd.f32 %v224, %v225
    %v227 = vrot.slane %v176, 4
    %v228 = vadd.f32 %v176, %v227
    %v229 = vrot.slane %v228, 2
    %v230 = vadd.f32 %v228, %v229
    %v231 = vrot.slane %v230, 1
    %v232 = vadd.f32 %v230, %v231
    %v233 = vrot.slane %v215, 4
    %v234 = vadd.f32 %v215, %v233
    %v235 = vrot.slane %v234, 2
    %v236 = vadd.f32 %v234, %v235
    %v237 = vrot.slane %v236, 1
    %v238 = vadd.f32 %v236, %v237
    %v239 = vrot.slane %v217, 4
    %v240 = vadd.f32 %v217, %v239
    %v241 = vrot.slane %v240, 2
    %v242 = vadd.f32 %v240, %v241
    %v243 = vrot.slane %v242, 1
    %v244 = vadd.f32 %v242, %v243
    %v245 = vrcp.pop 8.0
    %v246 = vmul.f32 %v226, %v245
    %v247 = vmul.f32 %v232, %v245
    %v248 = vmul.f32 %v238, %v245
    %v249 = vmul.f32 %v244, %v245
    %v250 = vmul.f32 %v174, %v174
    %v251 = vmul.f32 %v176, %v176
    %v252 = vmul.f32 %v215, %v215
    %v253 = vmul.f32 %v217, %v217
    %v254 = vrot.slane %v250, 4
    %v255 = vadd.f32 %v250, %v254
    %v256 = vrot.slane %v255, 2
    %v257 = vadd.f32 %v255, %v256
    %v258 = vrot.slane %v257, 1
    %v259 = vadd.f32 %v257, %v258
    %v260 = vrot.slane %v251, 4
    %v261 = vadd.f32 %v251, %v260
    %v262 = vrot.slane %v261, 2
    %v263 = vadd.f32 %v261, %v262
    %v264 = vrot.slane %v263, 1
    %v265 = vadd.f32 %v263, %v264
    %v266 = vrot.slane %v252, 4
    %v267 = vadd.f32 %v252, %v266
    %v268 = vrot.slane %v267, 2
    %v269 = vadd.f32 %v267, %v268
    %v270 = vrot.slane %v269, 1
    %v271 = vadd.f32 %v269, %v270
    %v272 = vrot.slane %v253, 4
    %v273 = vadd.f32 %v253, %v272
    %v274 = vrot.slane %v273, 2
    %v275 = vadd.f32 %v273, %v274
    %v276 = vrot.slane %v275, 1
    %v277 = vadd.f32 %v275, %v276
    %v278 = vmul.f32 %v259, %v245
    %v279 = vmul.f32 %v265, %v245
    %v280 = vmul.f32 %v271, %v245
    %v281 = vmul.f32 %v277, %v245
    %v282 = vmul.f32 %v246, %v246
    %v283 = vmul.f32 %v247, %v247
    %v284 = vmul.f32 %v248, %v248
    %v285 = vmul.f32 %v249, %v249
    %v286 = vsub.f32 %v278, %v282
    %v287 = vsub.f32 %v279, %v283
    %v288 = vsub.f32 %v280, %v284
    %v289 = vsub.f32 %v281, %v285
    %v290 = vmax.f32 %v286, 0.0
    %v291 = vmax.f32 %v287, 0.0
    %v292 = vmax.f32 %v288, 0.0
    %v293 = vmax.f32 %v289, 0.0
    %v294 = vld [vmem:[#allocation9] ss:$8 sm:$0xf]
    %s295 = scalar_lea.vmem [#allocation9], 1
    %v296 = vld [vmem:[%s295] ss:$8 sm:$0xf]
    %v297 = vadd.f32 %v290, 1e-05
    %v298 = vadd.f32 %v291, 1e-05
    %v299 = vadd.f32 %v292, 1e-05
    %v300 = vadd.f32 %v293, 1e-05
    %v301 = vrsqrt.pop %v297
    %v302 = vrsqrt.pop %v298
    %v303 = vrsqrt.pop %v299
    %v304 = vrsqrt.pop %v300
    %v309 = vcombine.low %v301, %v302
    %v310 = vcombine.low %v303, %v304
    %v312 = vunpack.c.l.s4 1966171168
    %v313 = vunpack.c.0.s8 %v312
    %v314 = vlaneseq
    %v315 = vshrl.u32 %v314, 7
    %v316 = vsub.s32 %v313, %v315
    %v317 = vrot.slane %v309, %v316
    %v319 = vunpack.c.l.s4 1966171168
    %v320 = vunpack.c.0.s8 %v319
    %v321 = vlaneseq
    %v322 = vshrl.u32 %v321, 7
    %v323 = vsub.s32 %v320, %v322
    %v324 = vrot.slane %v310, %v323
    %v325 = vcombine.low %v317, %v324
    %v327 = vunpack.c.l.s4 1966171168
    %v328 = vunpack.c.0.s8 %v327
    %v329 = vlaneseq
    %v330 = vshrl.u32 %v329, 7
    %v331 = vsub.s32 %v328, %v330
    %v332 = vrot.slane %v325, %v331
    %v334 = vmul.f32 %v294, %v332
    %v336 = vlaneseq
    %v337 = vshrl.u32 %v336, 7
    %v338 = vsub.s32 0, %v337
    %v339 = vrot.slane %v334, %v338
    %v340 = vlaneseq
    %v341 = vshrl.u32 %v340, 7
    %v342 = vsub.s32 1, %v341
    %v343 = vrot.slane %v334, %v342
    %v344 = vlaneseq
    %v345 = vshrl.u32 %v344, 7
    %v346 = vsub.s32 2, %v345
    %v347 = vrot.slane %v334, %v346
    %v348 = vlaneseq
    %v349 = vshrl.u32 %v348, 7
    %v350 = vsub.s32 3, %v349
    %v351 = vrot.slane %v334, %v350
    %v356 = vmul.f32 %v246, %v339
    %v357 = vmul.f32 %v247, %v343
    %v358 = vmul.f32 %v248, %v347
    %v359 = vmul.f32 %v249, %v351
    %v364 = vcombine.low %v356, %v357
    %v365 = vcombine.low %v358, %v359
    %v367 = vunpack.c.l.s4 1966171168
    %v368 = vunpack.c.0.s8 %v367
    %v369 = vlaneseq
    %v370 = vshrl.u32 %v369, 7
    %v371 = vsub.s32 %v368, %v370
    %v372 = vrot.slane %v364, %v371
    %v374 = vunpack.c.l.s4 1966171168
    %v375 = vunpack.c.0.s8 %v374
    %v376 = vlaneseq
    %v377 = vshrl.u32 %v376, 7
    %v378 = vsub.s32 %v375, %v377
    %v379 = vrot.slane %v365, %v378
    %v380 = vcombine.low %v372, %v379
    %v382 = vunpack.c.l.s4 1966171168
    %v383 = vunpack.c.0.s8 %v382
    %v384 = vlaneseq
    %v385 = vshrl.u32 %v384, 7
    %v386 = vsub.s32 %v383, %v385
    %v387 = vrot.slane %v380, %v386
    %v389 = vsub.f32 %v296, %v387
    %v390 = vmul.f32 %v174, %v339
    %v391 = vmul.f32 %v176, %v343
    %v392 = vmul.f32 %v215, %v347
    %v393 = vmul.f32 %v217, %v351
    %v395 = vlaneseq
    %v396 = vshrl.u32 %v395, 7
    %v397 = vsub.s32 0, %v396
    %v398 = vrot.slane %v389, %v397
    %v399 = vlaneseq
    %v400 = vshrl.u32 %v399, 7
    %v401 = vsub.s32 1, %v400
    %v402 = vrot.slane %v389, %v401
    %v403 = vlaneseq
    %v404 = vshrl.u32 %v403, 7
    %v405 = vsub.s32 2, %v404
    %v406 = vrot.slane %v389, %v405
    %v407 = vlaneseq
    %v408 = vshrl.u32 %v407, 7
    %v409 = vsub.s32 3, %v408
    %v410 = vrot.slane %v389, %v409
    %v415 = vadd.f32 %v390, %v398
    %v416 = vadd.f32 %v391, %v402
    %v417 = vadd.f32 %v392, %v406
    %v418 = vadd.f32 %v393, %v410
    %v419 = vmax.f32 %v415, 0.0
    %v420 = vmax.f32 %v416, 0.0
    %v421 = vmax.f32 %v417, 0.0
    %v422 = vmax.f32 %v418, 0.0
    %v423 = vpack.c.bf16 %v419, %v419
    %v424 = vpack.c.bf16 %v420, %v420
    %v425 = vpack.c.bf16 %v421, %v421
    %v426 = vpack.c.bf16 %v422, %v422
    %v427 = vld [vmem:[#allocation8] sm:$0xff]
    %v428 = vld [vmem:[#allocation8 + $0x8] sm:$0xf]
    %v429 = vld [vmem:[#allocation8 + $0xc] sm:$0xff]
    %v430 = vld [vmem:[#allocation8 + $0x14] sm:$0xf]
    %v431 = vld [vmem:[#allocation8 + $0x18] sm:$0xff]
    %v432 = vld [vmem:[#allocation8 + $0x20] sm:$0xf]
    %v433 = vld [vmem:[#allocation8 + $0x24] sm:$0xff]
    %v434 = vld [vmem:[#allocation8 + $0x2c] sm:$0xf]
    %v435 = vld [vmem:[#allocation8 + $0x30] sm:$0xff]
    %v436 = vld [vmem:[#allocation8 + $0x38] sm:$0xf]
    %v437 = vld [vmem:[#allocation8 + $0x3c] sm:$0xff]
    %v438 = vld [vmem:[#allocation8 + $0x44] sm:$0xf]
    %v439 = vld [vmem:[#allocation8 + $0x48] sm:$0xff]
    %v440 = vld [vmem:[#allocation8 + $0x50] sm:$0xf]
    %v441 = vld [vmem:[#allocation8 + $0x54] sm:$0xff]
    %v442 = vld [vmem:[#allocation8 + $0x5c] sm:$0xf]
    %v443 = vld [vmem:[#allocation8 + $0x60] sm:$0xff]
    %v444 = vld [vmem:[#allocation8 + $0x68] sm:$0xf]
    %v445 = vld [vmem:[#allocation8 + $0x6c] sm:$0xff]
    %v446 = vld [vmem:[#allocation8 + $0x74] sm:$0xf]
    %v447 = vld [vmem:[#allocation8 + $0x78] sm:$0xff]
    %v448 = vld [vmem:[#allocation8 + $0x80] sm:$0xf]
    %v449 = vld [vmem:[#allocation8 + $0x84] sm:$0xff]
    %v450 = vld [vmem:[#allocation8 + $0x8c] sm:$0xf]
    %v451 = vld [vmem:[#allocation8 + $0x90] sm:$0xff]
    %v452 = vld [vmem:[#allocation8 + $0x98] sm:$0xf]
    %v453 = vld [vmem:[#allocation8 + $0x9c] sm:$0xff]
    %v454 = vld [vmem:[#allocation8 + $0xa4] sm:$0xf]
    %v455 = vld [vmem:[#allocation8 + $0xa8] sm:$0xff]
    %v456 = vld [vmem:[#allocation8 + $0xb0] sm:$0xf]
    %v457 = vld [vmem:[#allocation8 + $0xb4] sm:$0xff]
    %v458 = vld [vmem:[#allocation8 + $0xbc] sm:$0xf]
    %v459 = vld [vmem:[#allocation8 + $0xc0] sm:$0xff]
    %v460 = vld [vmem:[#allocation8 + $0xc8] sm:$0xf]
    %v461 = vld [vmem:[#allocation8 + $0xcc] sm:$0xff]
    %v462 = vld [vmem:[#allocation8 + $0xd4] sm:$0xf]
    %v463 = vld [vmem:[#allocation8 + $0xd8] sm:$0xff]
    %v464 = vld [vmem:[#allocation8 + $0xe0] sm:$0xf]
    %v465 = vld [vmem:[#allocation8 + $0xe4] sm:$0xff]
    %v466 = vld [vmem:[#allocation8 + $0xec] sm:$0xf]
    %v467 = vld [vmem:[#allocation8 + $0xf0] sm:$0xff]
    %v468 = vld [vmem:[#allocation8 + $0xf8] sm:$0xf]
    %v469 = vld [vmem:[#allocation8 + $0xfc] sm:$0xff]
    %v470 = vld [vmem:[#allocation8 + $0x104] sm:$0xf]
    %v471 = vld [vmem:[#allocation8 + $0x108] sm:$0xff]
    %v472 = vld [vmem:[#allocation8 + $0x110] sm:$0xf]
    %v473 = vld [vmem:[#allocation8 + $0x114] sm:$0xff]
    %v474 = vld [vmem:[#allocation8 + $0x11c] sm:$0xf]
    %v475 = vld [vmem:[#allocation8 + $0x120] sm:$0xff]
    %v476 = vld [vmem:[#allocation8 + $0x128] sm:$0xf]
    %v477 = vld [vmem:[#allocation8 + $0x12c] sm:$0xff]
    %v478 = vld [vmem:[#allocation8 + $0x134] sm:$0xf]
    %v479 = vld [vmem:[#allocation8 + $0x138] sm:$0xff]
    %v480 = vld [vmem:[#allocation8 + $0x140] sm:$0xf]
    %v481 = vld [vmem:[#allocation8 + $0x144] sm:$0xff]
    %v482 = vld [vmem:[#allocation8 + $0x14c] sm:$0xf]
    %v483 = vld [vmem:[#allocation8 + $0x150] sm:$0xff]
    %v484 = vld [vmem:[#allocation8 + $0x158] sm:$0xf]
    %v485 = vld [vmem:[#allocation8 + $0x15c] sm:$0xff]
    %v486 = vld [vmem:[#allocation8 + $0x164] sm:$0xf]
    %v487 = vld [vmem:[#allocation8 + $0x168] sm:$0xff]
    %v488 = vld [vmem:[#allocation8 + $0x170] sm:$0xf]
    %v489 = vld [vmem:[#allocation8 + $0x174] sm:$0xff]
    %v490 = vld [vmem:[#allocation8 + $0x17c] sm:$0xf]
    %v491 = vld [vmem:[#allocation8 + $0x180] sm:$0xff]
    %v492 = vld [vmem:[#allocation8 + $0x188] sm:$0xf]
    %v493 = vld [vmem:[#allocation8 + $0x18c] sm:$0xff]
    %v494 = vld [vmem:[#allocation8 + $0x194] sm:$0xf]
    %v495 = vld [vmem:[#allocation8 + $0x198] sm:$0xff]
    %v496 = vld [vmem:[#allocation8 + $0x1a0] sm:$0xf]
    %v497 = vld [vmem:[#allocation8 + $0x1a4] sm:$0xff]
    %v498 = vld [vmem:[#allocation8 + $0x1ac] sm:$0xf]
    %v499 = vld [vmem:[#allocation8 + $0x1b0] sm:$0xff]
    %v500 = vld [vmem:[#allocation8 + $0x1b8] sm:$0xf]
    %v501 = vld [vmem:[#allocation8 + $0x1bc] sm:$0xff]
    %v502 = vld [vmem:[#allocation8 + $0x1c4] sm:$0xf]
    %v503 = vld [vmem:[#allocation8 + $0x1c8] sm:$0xff]
    %v504 = vld [vmem:[#allocation8 + $0x1d0] sm:$0xf]
    %v505 = vld [vmem:[#allocation8 + $0x1d4] sm:$0xff]
    %v506 = vld [vmem:[#allocation8 + $0x1dc] sm:$0xf]
    %v507 = vld [vmem:[#allocation8 + $0x1e0] sm:$0xff]
    %v508 = vld [vmem:[#allocation8 + $0x1e8] sm:$0xf]
    %v509 = vld [vmem:[#allocation8 + $0x1ec] sm:$0xff]
    %v510 = vld [vmem:[#allocation8 + $0x1f4] sm:$0xf]
    %v511 = vld [vmem:[#allocation8 + $0x1f8] sm:$0xff]
    %v512 = vld [vmem:[#allocation8 + $0x200] sm:$0xf]
    %v513 = vld [vmem:[#allocation8 + $0x204] sm:$0xff]
    %v514 = vld [vmem:[#allocation8 + $0x20c] sm:$0xf]
    %v515 = vld [vmem:[#allocation8 + $0x210] sm:$0xff]
    %v516 = vld [vmem:[#allocation8 + $0x218] sm:$0xf]
    %v517 = vld [vmem:[#allocation8 + $0x21c] sm:$0xff]
    %v518 = vld [vmem:[#allocation8 + $0x224] sm:$0xf]
    %v519 = vld [vmem:[#allocation8 + $0x228] sm:$0xff]
    %v520 = vld [vmem:[#allocation8 + $0x230] sm:$0xf]
    %v521 = vld [vmem:[#allocation8 + $0x234] sm:$0xff]
    %v522 = vld [vmem:[#allocation8 + $0x23c] sm:$0xf]
    %v523 = vld [vmem:[#allocation8 + $0x240] sm:$0xff]
    %v524 = vld [vmem:[#allocation8 + $0x248] sm:$0xf]
    %v525 = vld [vmem:[#allocation8 + $0x24c] sm:$0xff]
    %v526 = vld [vmem:[#allocation8 + $0x254] sm:$0xf]
    %v527 = vld [vmem:[#allocation8 + $0x258] sm:$0xff]
    %v528 = vld [vmem:[#allocation8 + $0x260] sm:$0xf]
    %v529 = vld [vmem:[#allocation8 + $0x264] sm:$0xff]
    %v530 = vld [vmem:[#allocation8 + $0x26c] sm:$0xf]
    %v531 = vld [vmem:[#allocation8 + $0x270] sm:$0xff]
    %v532 = vld [vmem:[#allocation8 + $0x278] sm:$0xf]
    %v533 = vld [vmem:[#allocation8 + $0x27c] sm:$0xff]
    %v534 = vld [vmem:[#allocation8 + $0x284] sm:$0xf]
    %v535 = vld [vmem:[#allocation8 + $0x288] sm:$0xff]
    %v536 = vld [vmem:[#allocation8 + $0x290] sm:$0xf]
    %v537 = vld [vmem:[#allocation8 + $0x294] sm:$0xff]
    %v538 = vld [vmem:[#allocation8 + $0x29c] sm:$0xf]
    %v539 = vld [vmem:[#allocation8 + $0x2a0] sm:$0xff]
    %v540 = vld [vmem:[#allocation8 + $0x2a8] sm:$0xf]
    %v541 = vld [vmem:[#allocation8 + $0x2ac] sm:$0xff]
    %v542 = vld [vmem:[#allocation8 + $0x2b4] sm:$0xf]
    %v543 = vld [vmem:[#allocation8 + $0x2b8] sm:$0xff]
    %v544 = vld [vmem:[#allocation8 + $0x2c0] sm:$0xf]
    %v545 = vld [vmem:[#allocation8 + $0x2c4] sm:$0xff]
    %v546 = vld [vmem:[#allocation8 + $0x2cc] sm:$0xf]
    %v547 = vld [vmem:[#allocation8 + $0x2d0] sm:$0xff]
    %v548 = vld [vmem:[#allocation8 + $0x2d8] sm:$0xf]
    %v549 = vld [vmem:[#allocation8 + $0x2dc] sm:$0xff]
    %v550 = vld [vmem:[#allocation8 + $0x2e4] sm:$0xf]
    %v551 = vld [vmem:[#allocation8 + $0x2e8] sm:$0xff]
    %v552 = vld [vmem:[#allocation8 + $0x2f0] sm:$0xf]
    %v553 = vld [vmem:[#allocation8 + $0x2f4] sm:$0xff]
    %v554 = vld [vmem:[#allocation8 + $0x2fc] sm:$0xf]
    %v683 = vunpack.c.l.b16 %v427
    %v684 = vunpack.c.h.b16 %v427
    %v685 = vunpack.c.l.b16 %v428
    %v686 = vunpack.c.l.b16 %v429
    %v687 = vunpack.c.h.b16 %v429
    %v688 = vunpack.c.l.b16 %v430
    %v689 = vunpack.c.l.b16 %v431
    %v690 = vunpack.c.h.b16 %v431
    %v691 = vunpack.c.l.b16 %v432
    %v692 = vunpack.c.l.b16 %v433
    %v693 = vunpack.c.h.b16 %v433
    %v694 = vunpack.c.l.b16 %v434
    %v695 = vunpack.c.l.b16 %v435
    %v696 = vunpack.c.h.b16 %v435
    %v697 = vunpack.c.l.b16 %v436
    %v698 = vunpack.c.l.b16 %v437
    %v699 = vunpack.c.h.b16 %v437
    %v700 = vunpack.c.l.b16 %v438
    %v701 = vunpack.c.l.b16 %v439
    %v702 = vunpack.c.h.b16 %v439
    %v703 = vunpack.c.l.b16 %v440
    %v704 = vunpack.c.l.b16 %v441
    %v705 = vunpack.c.h.b16 %v441
    %v706 = vunpack.c.l.b16 %v442
    %v707 = vunpack.c.l.b16 %v443
    %v708 = vunpack.c.h.b16 %v443
    %v709 = vunpack.c.l.b16 %v444
    %v710 = vunpack.c.l.b16 %v445
    %v711 = vunpack.c.h.b16 %v445
    %v712 = vunpack.c.l.b16 %v446
    %v713 = vunpack.c.l.b16 %v447
    %v714 = vunpack.c.h.b16 %v447
    %v715 = vunpack.c.l.b16 %v448
    %v716 = vunpack.c.l.b16 %v449
    %v717 = vunpack.c.h.b16 %v449
    %v718 = vunpack.c.l.b16 %v450
    %v719 = vunpack.c.l.b16 %v451
    %v720 = vunpack.c.h.b16 %v451
    %v721 = vunpack.c.l.b16 %v452
    %v722 = vunpack.c.l.b16 %v453
    %v723 = vunpack.c.h.b16 %v453
    %v724 = vunpack.c.l.b16 %v454
    %v725 = vunpack.c.l.b16 %v455
    %v726 = vunpack.c.h.b16 %v455
    %v727 = vunpack.c.l.b16 %v456
    %v728 = vunpack.c.l.b16 %v457
    %v729 = vunpack.c.h.b16 %v457
    %v730 = vunpack.c.l.b16 %v458
    %v731 = vunpack.c.l.b16 %v459
    %v732 = vunpack.c.h.b16 %v459
    %v733 = vunpack.c.l.b16 %v460
    %v734 = vunpack.c.l.b16 %v461
    %v735 = vunpack.c.h.b16 %v461
    %v736 = vunpack.c.l.b16 %v462
    %v737 = vunpack.c.l.b16 %v463
    %v738 = vunpack.c.h.b16 %v463
    %v739 = vunpack.c.l.b16 %v464
    %v740 = vunpack.c.l.b16 %v465
    %v741 = vunpack.c.h.b16 %v465
    %v742 = vunpack.c.l.b16 %v466
    %v743 = vunpack.c.l.b16 %v467
    %v744 = vunpack.c.h.b16 %v467
    %v745 = vunpack.c.l.b16 %v468
    %v746 = vunpack.c.l.b16 %v469
    %v747 = vunpack.c.h.b16 %v469
    %v748 = vunpack.c.l.b16 %v470
    %v749 = vunpack.c.l.b16 %v471
    %v750 = vunpack.c.h.b16 %v471
    %v751 = vunpack.c.l.b16 %v472
    %v752 = vunpack.c.l.b16 %v473
    %v753 = vunpack.c.h.b16 %v473
    %v754 = vunpack.c.l.b16 %v474
    %v755 = vunpack.c.l.b16 %v475
    %v756 = vunpack.c.h.b16 %v475
    %v757 = vunpack.c.l.b16 %v476
    %v758 = vunpack.c.l.b16 %v477
    %v759 = vunpack.c.h.b16 %v477
    %v760 = vunpack.c.l.b16 %v478
    %v761 = vunpack.c.l.b16 %v479
    %v762 = vunpack.c.h.b16 %v479
    %v763 = vunpack.c.l.b16 %v480
    %v764 = vunpack.c.l.b16 %v481
    %v765 = vunpack.c.h.b16 %v481
    %v766 = vunpack.c.l.b16 %v482
    %v767 = vunpack.c.l.b16 %v483
    %v768 = vunpack.c.h.b16 %v483
    %v769 = vunpack.c.l.b16 %v484
    %v770 = vunpack.c.l.b16 %v485
    %v771 = vunpack.c.h.b16 %v485
    %v772 = vunpack.c.l.b16 %v486
    %v773 = vunpack.c.l.b16 %v487
    %v774 = vunpack.c.h.b16 %v487
    %v775 = vunpack.c.l.b16 %v488
    %v776 = vunpack.c.l.b16 %v489
    %v777 = vunpack.c.h.b16 %v489
    %v778 = vunpack.c.l.b16 %v490
    %v779 = vunpack.c.l.b16 %v491
    %v780 = vunpack.c.h.b16 %v491
    %v781 = vunpack.c.l.b16 %v492
    %v782 = vunpack.c.l.b16 %v493
    %v783 = vunpack.c.h.b16 %v493
    %v784 = vunpack.c.l.b16 %v494
    %v785 = vunpack.c.l.b16 %v495
    %v786 = vunpack.c.h.b16 %v495
    %v787 = vunpack.c.l.b16 %v496
    %v788 = vunpack.c.l.b16 %v497
    %v789 = vunpack.c.h.b16 %v497
    %v790 = vunpack.c.l.b16 %v498
    %v791 = vunpack.c.l.b16 %v499
    %v792 = vunpack.c.h.b16 %v499
    %v793 = vunpack.c.l.b16 %v500
    %v794 = vunpack.c.l.b16 %v501
    %v795 = vunpack.c.h.b16 %v501
    %v796 = vunpack.c.l.b16 %v502
    %v797 = vunpack.c.l.b16 %v503
    %v798 = vunpack.c.h.b16 %v503
    %v799 = vunpack.c.l.b16 %v504
    %v800 = vunpack.c.l.b16 %v505
    %v801 = vunpack.c.h.b16 %v505
    %v802 = vunpack.c.l.b16 %v506
    %v803 = vunpack.c.l.b16 %v507
    %v804 = vunpack.c.h.b16 %v507
    %v805 = vunpack.c.l.b16 %v508
    %v806 = vunpack.c.l.b16 %v509
    %v807 = vunpack.c.h.b16 %v509
    %v808 = vunpack.c.l.b16 %v510
    %v809 = vunpack.c.l.b16 %v511
    %v810 = vunpack.c.h.b16 %v511
    %v811 = vunpack.c.l.b16 %v512
    %v812 = vunpack.c.l.b16 %v513
    %v813 = vunpack.c.h.b16 %v513
    %v814 = vunpack.c.l.b16 %v514
    %v815 = vunpack.c.l.b16 %v515
    %v816 = vunpack.c.h.b16 %v515
    %v817 = vunpack.c.l.b16 %v516
    %v818 = vunpack.c.l.b16 %v517
    %v819 = vunpack.c.h.b16 %v517
    %v820 = vunpack.c.l.b16 %v518
    %v821 = vunpack.c.l.b16 %v519
    %v822 = vunpack.c.h.b16 %v519
    %v823 = vunpack.c.l.b16 %v520
    %v824 = vunpack.c.l.b16 %v521
    %v825 = vunpack.c.h.b16 %v521
    %v826 = vunpack.c.l.b16 %v522
    %v827 = vunpack.c.l.b16 %v523
    %v828 = vunpack.c.h.b16 %v523
    %v829 = vunpack.c.l.b16 %v524
    %v830 = vunpack.c.l.b16 %v525
    %v831 = vunpack.c.h.b16 %v525
    %v832 = vunpack.c.l.b16 %v526
    %v833 = vunpack.c.l.b16 %v527
    %v834 = vunpack.c.h.b16 %v527
    %v835 = vunpack.c.l.b16 %v528
    %v836 = vunpack.c.l.b16 %v529
    %v837 = vunpack.c.h.b16 %v529
    %v838 = vunpack.c.l.b16 %v530
    %v839 = vunpack.c.l.b16 %v531
    %v840 = vunpack.c.h.b16 %v531
    %v841 = vunpack.c.l.b16 %v532
    %v842 = vunpack.c.l.b16 %v533
    %v843 = vunpack.c.h.b16 %v533
    %v844 = vunpack.c.l.b16 %v534
    %v845 = vunpack.c.l.b16 %v535
    %v846 = vunpack.c.h.b16 %v535
    %v847 = vunpack.c.l.b16 %v536
    %v848 = vunpack.c.l.b16 %v537
    %v849 = vunpack.c.h.b16 %v537
    %v850 = vunpack.c.l.b16 %v538
    %v851 = vunpack.c.l.b16 %v539
    %v852 = vunpack.c.h.b16 %v539
    %v853 = vunpack.c.l.b16 %v540
    %v854 = vunpack.c.l.b16 %v541
    %v855 = vunpack.c.h.b16 %v541
    %v856 = vunpack.c.l.b16 %v542
    %v857 = vunpack.c.l.b16 %v543
    %v858 = vunpack.c.h.b16 %v543
    %v859 = vunpack.c.l.b16 %v544
    %v860 = vunpack.c.l.b16 %v545
    %v861 = vunpack.c.h.b16 %v545
    %v862 = vunpack.c.l.b16 %v546
    %v863 = vunpack.c.l.b16 %v547
    %v864 = vunpack.c.h.b16 %v547
    %v865 = vunpack.c.l.b16 %v548
    %v866 = vunpack.c.l.b16 %v549
    %v867 = vunpack.c.h.b16 %v549
    %v868 = vunpack.c.l.b16 %v550
    %v869 = vunpack.c.l.b16 %v551
    %v870 = vunpack.c.h.b16 %v551
    %v871 = vunpack.c.l.b16 %v552
    %v872 = vunpack.c.l.b16 %v553
    %v873 = vunpack.c.h.b16 %v553
    %v874 = vunpack.c.l.b16 %v554
    %v875 = vpack.c.b16 %v686, %v683
    %v876 = vpack.c.b16 %v687, %v684
    %v877 = vpack.c.b16 %v688, %v685
    %v878 = vpack.c.b16 %v692, %v689
    %v879 = vpack.c.b16 %v693, %v690
    %v880 = vpack.c.b16 %v694, %v691
    %v881 = vpack.c.b16 %v698, %v695
    %v882 = vpack.c.b16 %v699, %v696
    %v883 = vpack.c.b16 %v700, %v697
    %v884 = vpack.c.b16 %v704, %v701
    %v885 = vpack.c.b16 %v705, %v702
    %v886 = vpack.c.b16 %v706, %v703
    %v887 = vpack.c.b16 %v710, %v707
    %v888 = vpack.c.b16 %v711, %v708
    %v889 = vpack.c.b16 %v712, %v709
    %v890 = vpack.c.b16 %v716, %v713
    %v891 = vpack.c.b16 %v717, %v714
    %v892 = vpack.c.b16 %v718, %v715
    %v893 = vpack.c.b16 %v722, %v719
    %v894 = vpack.c.b16 %v723, %v720
    %v895 = vpack.c.b16 %v724, %v721
    %v896 = vpack.c.b16 %v728, %v725
    %v897 = vpack.c.b16 %v729, %v726
    %v898 = vpack.c.b16 %v730, %v727
    %v899 = vpack.c.b16 %v734, %v731
    %v900 = vpack.c.b16 %v735, %v732
    %v901 = vpack.c.b16 %v736, %v733
    %v902 = vpack.c.b16 %v740, %v737
    %v903 = vpack.c.b16 %v741, %v738
    %v904 = vpack.c.b16 %v742, %v739
    %v905 = vpack.c.b16 %v746, %v743
    %v906 = vpack.c.b16 %v747, %v744
    %v907 = vpack.c.b16 %v748, %v745
    %v908 = vpack.c.b16 %v752, %v749
    %v909 = vpack.c.b16 %v753, %v750
    %v910 = vpack.c.b16 %v754, %v751
    %v911 = vpack.c.b16 %v758, %v755
    %v912 = vpack.c.b16 %v759, %v756
    %v913 = vpack.c.b16 %v760, %v757
    %v914 = vpack.c.b16 %v764, %v761
    %v915 = vpack.c.b16 %v765, %v762
    %v916 = vpack.c.b16 %v766, %v763
    %v917 = vpack.c.b16 %v770, %v767
    %v918 = vpack.c.b16 %v771, %v768
    %v919 = vpack.c.b16 %v772, %v769
    %v920 = vpack.c.b16 %v776, %v773
    %v921 = vpack.c.b16 %v777, %v774
    %v922 = vpack.c.b16 %v778, %v775
    %v923 = vpack.c.b16 %v782, %v779
    %v924 = vpack.c.b16 %v783, %v780
    %v925 = vpack.c.b16 %v784, %v781
    %v926 = vpack.c.b16 %v788, %v785
    %v927 = vpack.c.b16 %v789, %v786
    %v928 = vpack.c.b16 %v790, %v787
    %v929 = vpack.c.b16 %v794, %v791
    %v930 = vpack.c.b16 %v795, %v792
    %v931 = vpack.c.b16 %v796, %v793
    %v932 = vpack.c.b16 %v800, %v797
    %v933 = vpack.c.b16 %v801, %v798
    %v934 = vpack.c.b16 %v802, %v799
    %v935 = vpack.c.b16 %v806, %v803
    %v936 = vpack.c.b16 %v807, %v804
    %v937 = vpack.c.b16 %v808, %v805
    %v938 = vpack.c.b16 %v812, %v809
    %v939 = vpack.c.b16 %v813, %v810
    %v940 = vpack.c.b16 %v814, %v811
    %v941 = vpack.c.b16 %v818, %v815
    %v942 = vpack.c.b16 %v819, %v816
    %v943 = vpack.c.b16 %v820, %v817
    %v944 = vpack.c.b16 %v824, %v821
    %v945 = vpack.c.b16 %v825, %v822
    %v946 = vpack.c.b16 %v826, %v823
    %v947 = vpack.c.b16 %v830, %v827
    %v948 = vpack.c.b16 %v831, %v828
    %v949 = vpack.c.b16 %v832, %v829
    %v950 = vpack.c.b16 %v836, %v833
    %v951 = vpack.c.b16 %v837, %v834
    %v952 = vpack.c.b16 %v838, %v835
    %v953 = vpack.c.b16 %v842, %v839
    %v954 = vpack.c.b16 %v843, %v840
    %v955 = vpack.c.b16 %v844, %v841
    %v956 = vpack.c.b16 %v848, %v845
    %v957 = vpack.c.b16 %v849, %v846
    %v958 = vpack.c.b16 %v850, %v847
    %v959 = vpack.c.b16 %v854, %v851
    %v960 = vpack.c.b16 %v855, %v852
    %v961 = vpack.c.b16 %v856, %v853
    %v962 = vpack.c.b16 %v860, %v857
    %v963 = vpack.c.b16 %v861, %v858
    %v964 = vpack.c.b16 %v862, %v859
    %v965 = vpack.c.b16 %v866, %v863
    %v966 = vpack.c.b16 %v867, %v864
    %v967 = vpack.c.b16 %v868, %v865
    %v968 = vpack.c.b16 %v872, %v869
    %v969 = vpack.c.b16 %v873, %v870
    %v970 = vpack.c.b16 %v874, %v871
    %1067 = vmatprep.subr.bf16.mxu0 %v876
    %1068 = vmatpush1.bf16.msra.mxu0 %v875
    %1069 = vmatprep.subr.bf16.mxu0 %v879
    %1070 = vmatpush1.bf16.msra.mxu0 %v878
    %1071 = vmatprep.subr.bf16.mxu0 %v882
    %1072 = vmatpush1.bf16.msra.mxu0 %v881
    %1073 = vmatprep.subr.bf16.mxu0 %v885
    %1074 = vmatpush1.bf16.msra.mxu0 %v884
    %1075 = vmatprep.subr.bf16.mxu0 %v888
    %1076 = vmatpush1.bf16.msra.mxu0 %v887
    %1077 = vmatprep.subr.bf16.mxu0 %v891
    %1078 = vmatpush1.bf16.msra.mxu0 %v890
    %1079 = vmatprep.subr.bf16.mxu0 %v894
    %1080 = vmatpush1.bf16.msra.mxu0 %v893
    %1081 = vmatprep.subr.bf16.mxu0 %v897
    %1082 = vmatpush1.bf16.msra.mxu0 %v896
    %1083 = vmatprep.subr.bf16.mxu0 %v900
    %1084 = vmatpush1.bf16.msra.mxu0 %v899
    %1085 = vmatprep.subr.bf16.mxu0 %v903
    %1086 = vmatpush1.bf16.msra.mxu0 %v902
    %1087 = vmatprep.subr.bf16.mxu0 %v906
    %1088 = vmatpush1.bf16.msra.mxu0 %v905
    %1089 = vmatprep.subr.bf16.mxu0 %v909
    %1090 = vmatpush1.bf16.msra.mxu0 %v908
    %1091 = vmatprep.subr.bf16.mxu0 %v912
    %1092 = vmatpush1.bf16.msra.mxu0 %v911
    %1093 = vmatprep.subr.bf16.mxu0 %v915
    %1094 = vmatpush1.bf16.msra.mxu0 %v914
    %1095 = vmatprep.subr.bf16.mxu0 %v918
    %1096 = vmatpush1.bf16.msra.mxu0 %v917
    %1097 = vmatprep.subr.bf16.mxu0 %v921
    %1098 = vmatpush1.bf16.msra.mxu0 %v920
    %1099 = vmatprep.mubr.bf16.mxu0 %v424
    %1100 = vmatmul.mubr.bf16.gmra.mrb[0].mxu0 %v423
    %v1101 = vpop.f32.mrb[0].mxu0
    %v1102 = vadd.f32 0.0, %v1101
    %v1103 = vpop.f32.mrb[0].mxu0
    %v1104 = vadd.f32 0.0, %v1103
    %v1105 = vpop.f32.mrb[0].mxu0
    %v1106 = vpop.f32.mrb[0].mxu0
    %1107 = vdwg.mxu0
    %1108 = vmatprep.subr.bf16.mxu0 %v924
    %1109 = vmatpush1.bf16.msra.mxu0 %v923
    %1110 = vmatprep.subr.bf16.mxu0 %v927
    %1111 = vmatpush1.bf16.msra.mxu0 %v926
    %1112 = vmatprep.subr.bf16.mxu0 %v930
    %1113 = vmatpush1.bf16.msra.mxu0 %v929
    %1114 = vmatprep.subr.bf16.mxu0 %v933
    %1115 = vmatpush1.bf16.msra.mxu0 %v932
    %1116 = vmatprep.subr.bf16.mxu0 %v936
    %1117 = vmatpush1.bf16.msra.mxu0 %v935
    %1118 = vmatprep.subr.bf16.mxu0 %v939
    %1119 = vmatpush1.bf16.msra.mxu0 %v938
    %1120 = vmatprep.subr.bf16.mxu0 %v942
    %1121 = vmatpush1.bf16.msra.mxu0 %v941
    %1122 = vmatprep.subr.bf16.mxu0 %v945
    %1123 = vmatpush1.bf16.msra.mxu0 %v944
    %1124 = vmatprep.subr.bf16.mxu0 %v948
    %1125 = vmatpush1.bf16.msra.mxu0 %v947
    %1126 = vmatprep.subr.bf16.mxu0 %v951
    %1127 = vmatpush1.bf16.msra.mxu0 %v950
    %1128 = vmatprep.subr.bf16.mxu0 %v954
    %1129 = vmatpush1.bf16.msra.mxu0 %v953
    %1130 = vmatprep.subr.bf16.mxu0 %v957
    %1131 = vmatpush1.bf16.msra.mxu0 %v956
    %1132 = vmatprep.subr.bf16.mxu0 %v960
    %1133 = vmatpush1.bf16.msra.mxu0 %v959
    %1134 = vmatprep.subr.bf16.mxu0 %v963
    %1135 = vmatpush1.bf16.msra.mxu0 %v962
    %1136 = vmatprep.subr.bf16.mxu0 %v966
    %1137 = vmatpush1.bf16.msra.mxu0 %v965
    %1138 = vmatprep.subr.bf16.mxu0 %v969
    %1139 = vmatpush1.bf16.msra.mxu0 %v968
    %1140 = vmatprep.mubr.bf16.mxu0 %v426
    %1141 = vmatmul.mubr.bf16.gmra.mrb[0].mxu0 %v425
    %v1142 = vpop.f32.mrb[0].mxu0
    %v1143 = vadd.f32 %v1102, %v1142
    %v1144 = vpop.f32.mrb[0].mxu0
    %v1145 = vadd.f32 %v1104, %v1144
    %v1146 = vpop.f32.mrb[0].mxu0
    %v1147 = vpop.f32.mrb[0].mxu0
    %1148 = vdwg.mxu0
    %1149 = vmatprep.subr.bf16.mxu0 0
    %1150 = vmatpush1.bf16.msra.mxu0 %v877
    %1151 = vmatprep.subr.bf16.mxu0 0
    %1152 = vmatpush1.bf16.msra.mxu0 %v880
    %1153 = vmatprep.subr.bf16.mxu0 0
    %1154 = vmatpush1.bf16.msra.mxu0 %v883
    %1155 = vmatprep.subr.bf16.mxu0 0
    %1156 = vmatpush1.bf16.msra.mxu0 %v886
    %1157 = vmatprep.subr.bf16.mxu0 0
    %1158 = vmatpush1.bf16.msra.mxu0 %v889
    %1159 = vmatprep.subr.bf16.mxu0 0
    %1160 = vmatpush1.bf16.msra.mxu0 %v892
    %1161 = vmatprep.subr.bf16.mxu0 0
    %1162 = vmatpush1.bf16.msra.mxu0 %v895
    %1163 = vmatprep.subr.bf16.mxu0 0
    %1164 = vmatpush1.bf16.msra.mxu0 %v898
    %1165 = vmatprep.subr.bf16.mxu0 0
    %1166 = vmatpush1.bf16.msra.mxu0 %v901
    %1167 = vmatprep.subr.bf16.mxu0 0
    %1168 = vmatpush1.bf16.msra.mxu0 %v904
    %1169 = vmatprep.subr.bf16.mxu0 0
    %1170 = vmatpush1.bf16.msra.mxu0 %v907
    %1171 = vmatprep.subr.bf16.mxu0 0
    %1172 = vmatpush1.bf16.msra.mxu0 %v910
    %1173 = vmatprep.subr.bf16.mxu0 0
    %1174 = vmatpush1.bf16.msra.mxu0 %v913
    %1175 = vmatprep.subr.bf16.mxu0 0
    %1176 = vmatpush1.bf16.msra.mxu0 %v916
    %1177 = vmatprep.subr.bf16.mxu0 0
    %1178 = vmatpush1.bf16.msra.mxu0 %v919
    %1179 = vmatprep.subr.bf16.mxu0 0
    %1180 = vmatpush1.bf16.msra.mxu0 %v922
    %1181 = vmatprep.mubr.bf16.mxu0 %v424
    %1182 = vmatmul.mubr.bf16.gmra.mrb[0].mxu0 %v423
    %v1183 = vpop.f32.mrb[0].mxu0
    %v1184 = vadd.f32 0.0, %v1183
    %v1185 = vpop.f32.mrb[0].mxu0
    %v1186 = vpop.f32.mrb[0].mxu0
    %v1187 = vpop.f32.mrb[0].mxu0
    %1188 = vdwg.mxu0
    %1189 = vmatprep.subr.bf16.mxu0 0
    %1190 = vmatpush1.bf16.msra.mxu0 %v925
    %1191 = vmatprep.subr.bf16.mxu0 0
    %1192 = vmatpush1.bf16.msra.mxu0 %v928
    %1193 = vmatprep.subr.bf16.mxu0 0
    %1194 = vmatpush1.bf16.msra.mxu0 %v931
    %1195 = vmatprep.subr.bf16.mxu0 0
    %1196 = vmatpush1.bf16.msra.mxu0 %v934
    %1197 = vmatprep.subr.bf16.mxu0 0
    %1198 = vmatpush1.bf16.msra.mxu0 %v937
    %1199 = vmatprep.subr.bf16.mxu0 0
    %1200 = vmatpush1.bf16.msra.mxu0 %v940
    %1201 = vmatprep.subr.bf16.mxu0 0
    %1202 = vmatpush1.bf16.msra.mxu0 %v943
    %1203 = vmatprep.subr.bf16.mxu0 0
    %1204 = vmatpush1.bf16.msra.mxu0 %v946
    %1205 = vmatprep.subr.bf16.mxu0 0
    %1206 = vmatpush1.bf16.msra.mxu0 %v949
    %1207 = vmatprep.subr.bf16.mxu0 0
    %1208 = vmatpush1.bf16.msra.mxu0 %v952
    %1209 = vmatprep.subr.bf16.mxu0 0
    %1210 = vmatpush1.bf16.msra.mxu0 %v955
    %1211 = vmatprep.subr.bf16.mxu0 0
    %1212 = vmatpush1.bf16.msra.mxu0 %v958
    %1213 = vmatprep.subr.bf16.mxu0 0
    %1214 = vmatpush1.bf16.msra.mxu0 %v961
    %1215 = vmatprep.subr.bf16.mxu0 0
    %1216 = vmatpush1.bf16.msra.mxu0 %v964
    %1217 = vmatprep.subr.bf16.mxu0 0
    %1218 = vmatpush1.bf16.msra.mxu0 %v967
    %1219 = vmatprep.subr.bf16.mxu0 0
    %1220 = vmatpush1.bf16.msra.mxu0 %v970
    %1221 = vmatprep.mubr.bf16.mxu0 %v426
    %1222 = vmatmul.mubr.bf16.gmra.mrb[0].mxu0 %v425
    %v1223 = vpop.f32.mrb[0].mxu0
    %v1224 = vadd.f32 %v1184, %v1223
    %v1225 = vpop.f32.mrb[0].mxu0
    %v1226 = vpop.f32.mrb[0].mxu0
    %v1227 = vpop.f32.mrb[0].mxu0
    %1228 = vdwg.mxu0
    %v1229 = vrot.slane %v1143, 4
    %v1230 = vadd.f32 %v1143, %v1229
    %v1231 = vrot.slane %v1230, 2
    %v1232 = vadd.f32 %v1230, %v1231
    %v1233 = vrot.slane %v1232, 1
    %v1234 = vadd.f32 %v1232, %v1233
    %v1235 = vrot.slane %v1145, 4
    %v1236 = vadd.f32 %v1145, %v1235
    %v1237 = vrot.slane %v1236, 2
    %v1238 = vadd.f32 %v1236, %v1237
    %v1239 = vrot.slane %v1238, 1
    %v1240 = vadd.f32 %v1238, %v1239
    %v1241 = vrot.slane %v1224, 4
    %v1242 = vadd.f32 %v1224, %v1241
    %v1243 = vrot.slane %v1242, 2
    %v1244 = vadd.f32 %v1242, %v1243
    %v1245 = vrot.slane %v1244, 1
    %v1246 = vadd.f32 %v1244, %v1245
    %v1247 = vmul.f32 %v1234, %v245
    %v1248 = vmul.f32 %v1240, %v245
    %v1249 = vmul.f32 %v1246, %v245
    %v1250 = vmul.f32 %v1143, %v1143
    %v1251 = vmul.f32 %v1145, %v1145
    %v1252 = vmul.f32 %v1224, %v1224
    %v1253 = vrot.slane %v1250, 4
    %v1254 = vadd.f32 %v1250, %v1253
    %v1255 = vrot.slane %v1254, 2
    %v1256 = vadd.f32 %v1254, %v1255
    %v1257 = vrot.slane %v1256, 1
    %v1258 = vadd.f32 %v1256, %v1257
    %v1259 = vrot.slane %v1251, 4
    %v1260 = vadd.f32 %v1251, %v1259
    %v1261 = vrot.slane %v1260, 2
    %v1262 = vadd.f32 %v1260, %v1261
    %v1263 = vrot.slane %v1262, 1
    %v1264 = vadd.f32 %v1262, %v1263
    %v1265 = vrot.slane %v1252, 4
    %v1266 = vadd.f32 %v1252, %v1265
    %v1267 = vrot.slane %v1266, 2
    %v1268 = vadd.f32 %v1266, %v1267
    %v1269 = vrot.slane %v1268, 1
    %v1270 = vadd.f32 %v1268, %v1269
    %v1271 = vmul.f32 %v1258, %v245
    %v1272 = vmul.f32 %v1264, %v245
    %v1273 = vmul.f32 %v1270, %v245
    %v1274 = vmul.f32 %v1247, %v1247
    %v1275 = vmul.f32 %v1248, %v1248
    %v1276 = vmul.f32 %v1249, %v1249
    %v1277 = vsub.f32 %v1271, %v1274
    %v1278 = vsub.f32 %v1272, %v1275
    %v1279 = vsub.f32 %v1273, %v1276
    %v1280 = vmax.f32 %v1277, 0.0
    %v1281 = vmax.f32 %v1278, 0.0
    %v1282 = vmax.f32 %v1279, 0.0
    %s1283 = scalar_lea.vmem [#allocation9], 2
    %v1284 = vld [vmem:[%s1283] ss:$8 sm:$0x7]
    %s1285 = scalar_lea.vmem [#allocation9], 3
    %v1286 = vld [vmem:[%s1285] ss:$8 sm:$0x7]
    %v1287 = vadd.f32 %v1280, 1e-05
    %v1288 = vadd.f32 %v1281, 1e-05
    %v1289 = vadd.f32 %v1282, 1e-05
    %v1290 = vrsqrt.pop %v1287
    %v1291 = vrsqrt.pop %v1288
    %v1292 = vrsqrt.pop %v1289
    %v1296 = vcombine.low %v1290, %v1291
    %v1298 = vunpack.c.l.s4 1966171168
    %v1299 = vunpack.c.0.s8 %v1298
    %v1300 = vlaneseq
    %v1301 = vshrl.u32 %v1300, 7
    %v1302 = vsub.s32 %v1299, %v1301
    %v1303 = vrot.slane %v1296, %v1302
    %v1305 = vunpack.c.l.s4 1966171168
    %v1306 = vunpack.c.0.s8 %v1305
    %v1307 = vlaneseq
    %v1308 = vshrl.u32 %v1307, 7
    %v1309 = vsub.s32 %v1306, %v1308
    %v1310 = vrot.slane %v1292, %v1309
    %v1311 = vcombine.low %v1303, %v1310
    %v1313 = vunpack.c.l.s4 1966171168
    %v1314 = vunpack.c.0.s8 %v1313
    %v1315 = vlaneseq
    %v1316 = vshrl.u32 %v1315, 7
    %v1317 = vsub.s32 %v1314, %v1316
    %v1318 = vrot.slane %v1311, %v1317
    %v1320 = vmul.f32 %v1284, %v1318
    %v1322 = vlaneseq
    %v1323 = vshrl.u32 %v1322, 7
    %v1324 = vsub.s32 0, %v1323
    %v1325 = vrot.slane %v1320, %v1324
    %v1326 = vlaneseq
    %v1327 = vshrl.u32 %v1326, 7
    %v1328 = vsub.s32 1, %v1327
    %v1329 = vrot.slane %v1320, %v1328
    %v1330 = vlaneseq
    %v1331 = vshrl.u32 %v1330, 7
    %v1332 = vsub.s32 2, %v1331
    %v1333 = vrot.slane %v1320, %v1332
    %v1337 = vmul.f32 %v1247, %v1325
    %v1338 = vmul.f32 %v1248, %v1329
    %v1339 = vmul.f32 %v1249, %v1333
    %v1343 = vcombine.low %v1337, %v1338
    %v1345 = vunpack.c.l.s4 1966171168
    %v1346 = vunpack.c.0.s8 %v1345
    %v1347 = vlaneseq
    %v1348 = vshrl.u32 %v1347, 7
    %v1349 = vsub.s32 %v1346, %v1348
    %v1350 = vrot.slane %v1343, %v1349
    %v1352 = vunpack.c.l.s4 1966171168
    %v1353 = vunpack.c.0.s8 %v1352
    %v1354 = vlaneseq
    %v1355 = vshrl.u32 %v1354, 7
    %v1356 = vsub.s32 %v1353, %v1355
    %v1357 = vrot.slane %v1339, %v1356
    %v1358 = vcombine.low %v1350, %v1357
    %v1360 = vunpack.c.l.s4 1966171168
    %v1361 = vunpack.c.0.s8 %v1360
    %v1362 = vlaneseq
    %v1363 = vshrl.u32 %v1362, 7
    %v1364 = vsub.s32 %v1361, %v1363
    %v1365 = vrot.slane %v1358, %v1364
    %v1367 = vsub.f32 %v1286, %v1365
    %v1368 = vmul.f32 %v1143, %v1325
    %v1369 = vmul.f32 %v1145, %v1329
    %v1370 = vmul.f32 %v1224, %v1333
    %v1372 = vlaneseq
    %v1373 = vshrl.u32 %v1372, 7
    %v1374 = vsub.s32 0, %v1373
    %v1375 = vrot.slane %v1367, %v1374
    %v1376 = vlaneseq
    %v1377 = vshrl.u32 %v1376, 7
    %v1378 = vsub.s32 1, %v1377
    %v1379 = vrot.slane %v1367, %v1378
    %v1380 = vlaneseq
    %v1381 = vshrl.u32 %v1380, 7
    %v1382 = vsub.s32 2, %v1381
    %v1383 = vrot.slane %v1367, %v1382
    %v1387 = vadd.f32 %v1368, %v1375
    %v1388 = vadd.f32 %v1369, %v1379
    %v1389 = vadd.f32 %v1370, %v1383
    %v1390 = vmax.f32 %v1387, 0.0
    %v1391 = vmax.f32 %v1388, 0.0
    %v1392 = vmax.f32 %v1389, 0.0
    %s1393 = scalar_lea.vmem [#allocation9], 4
    %v1394 = vld [vmem:[%s1393] ss:$8 sm:$0x7]
    %v1396 = vlaneseq
    %v1397 = vshrl.u32 %v1396, 7
    %v1398 = vsub.s32 0, %v1397
    %v1399 = vrot.slane %v1394, %v1398
    %v1400 = vlaneseq
    %v1401 = vshrl.u32 %v1400, 7
    %v1402 = vsub.s32 1, %v1401
    %v1403 = vrot.slane %v1394, %v1402
    %v1404 = vlaneseq
    %v1405 = vshrl.u32 %v1404, 7
    %v1406 = vsub.s32 2, %v1405
    %v1407 = vrot.slane %v1394, %v1406
    %v1411 = vmul.f32 %v1390, %v1399
    %v1412 = vmul.f32 %v1391, %v1403
    %v1413 = vmul.f32 %v1392, %v1407
    %v1414 = vadd.f32 %v1411, %v1412
    %v1415 = vadd.f32 %v1414, %v1413
    %1416 = vadd.xlane.f32.xlu0 %v1415
    %v1417 = vpop.xlane.xlu0 %1416
    %v1418 = vstv %s84
    %v1419 = vadd.f32 %v1417, %v1418
    %v1420 = vtanh.pop %v1419
    %v1421 = vstv %s83
    %v1422 = vmul.f32 %v1420, %v1421
    %vm1423 = vcmask 7168
    %1424 = vst.msk [vmem:[%s5] sm:$0xff] %vm1423, %v1422
    // Predicated region
    $region42: #{tpu_custom_call.1} parent=1 // pred_check
      _
    $region43: #{tpu_custom_call.1} parent=1 // pred_check_branch
      %1426 = sbr.rel (0) target = $region45
    $region44: #{tpu_custom_call.1} parent=1 // pred_region
      _
    $region45: #{tpu_custom_call.1} parent=1 // pred_fallthru
      _
    // Predicated region
    $region46: #{tpu_custom_call.1} parent=1 // pred_check
      _
    $region47: #{tpu_custom_call.1} parent=1 // pred_check_branch
      %1428 = sbr.rel (0) target = $region49
    $region48: #{tpu_custom_call.1} parent=1 // pred_region
      _
    $region49: #{tpu_custom_call.1} parent=1 // pred_fallthru
      _
    %1429 = vsyncpa [#allocation3], 1
    %1430 = vsyncpa [#allocation7], 1
    %1431 = vsyncpa [#allocation10], 1
    %1432 = vsyncpa [#allocation4], 1

</llo_original>
